<compile_context>
chip_gen: v5e
topology: v5e:2x2
jax: 0.10.0
libtpu: 0.0.40
codegen_flags: <defaults>
</compile_context>

<pallas_src>
import math
import functools

import jax
import jax.numpy as jnp
from jax import lax
from jax.experimental import pallas as pl


def _encoder_block_kernel(
    # activations / mask
    x_ref, mask_ref,
    # attention params (fused QKV, pre-scaled Wq/bq; output projection)
    wqkv_ref, bqkv_ref, wo_ref, bo_ref,
    # layer norms
    g1_ref, be1_ref, g2_ref, be2_ref,
    # feed-forward
    w1_ref, b1_ref, w2_ref, b2_ref,
    # output
    o_ref,
    *, n_heads, key_dim, value_dim, matmul_dtype,
):
    f32 = jnp.float32
    x = x_ref[...].astype(f32)                 # (N, D), N = B*S
    x_mm = x.astype(matmul_dtype)              # MXU operand dtype (f32 or bf16)
    mask_add = mask_ref[...]                   # (N, N): 0 valid / -1e9 masked

    hk = n_heads * key_dim
    hv = n_heads * value_dim

    # ---- Fused QKV projection: one (N, D) @ (D, 2*Hk + Hv) matmul.
    # Wq and bq were pre-scaled by 1/sqrt(key_dim) in prepare_params, so there is
    # no per-head score scaling below.
    qkv = jnp.dot(x_mm, wqkv_ref[...], preferred_element_type=f32) + bqkv_ref[...]

    # ---- Per-head attention with batch folded into M: scores are (N, N); the
    # additive mask removes cross-batch attention and padded keys.
    head_outs = []
    for h in range(n_heads):                   # static, small head count
        qh = qkv[:, h * key_dim:(h + 1) * key_dim].astype(matmul_dtype)
        kh = qkv[:, hk + h * key_dim:hk + (h + 1) * key_dim].astype(matmul_dtype)
        vh = qkv[:, 2 * hk + h * value_dim:
                 2 * hk + (h + 1) * value_dim].astype(matmul_dtype)

        # s = qh @ kh^T  (contract last dims; no explicit transpose materialized)
        s = lax.dot_general(qh, kh, (((1,), (1,)), ((), ())),
                            preferred_element_type=f32)          # (N, N)
        s = s + mask_add
        s = s - jnp.max(s, axis=-1, keepdims=True)                # stable softmax
        p = jnp.exp(s)
        p = p / jnp.sum(p, axis=-1, keepdims=True)                # exact reciprocal
        head_outs.append(jnp.dot(p.astype(matmul_dtype), vh,
                                 preferred_element_type=f32))     # (N, dv)

    # Static lane concat (within one 128-lane tile) + single output projection.
    o_cat = jnp.concatenate(head_outs, axis=-1).astype(matmul_dtype)  # (N, H*dv)
    attn = jnp.dot(o_cat, wo_ref[...], preferred_element_type=f32) + bo_ref[...]

    # ---- LayerNorm (eps matches torch default 1e-5); all element-wise math f32 ----
    def layer_norm(y, gamma, beta, eps=1e-5):
        mu = jnp.mean(y, axis=-1, keepdims=True)
        var = jnp.mean((y - mu) ** 2, axis=-1, keepdims=True)
        return (y - mu) * lax.rsqrt(var + eps) * gamma + beta

    x1 = layer_norm(x + attn, g1_ref[...], be1_ref[...])

    # ---- Feed-forward: Linear(D, 4D) -> exact GELU -> Linear(4D, D) ----
    h1 = jnp.dot(x1.astype(matmul_dtype), w1_ref[...],
                 preferred_element_type=f32) + b1_ref[...]
    h1 = 0.5 * h1 * (1.0 + lax.erf(h1 * jnp.float32(1.0 / math.sqrt(2.0))))
    ff = jnp.dot(h1.astype(matmul_dtype), w2_ref[...],
                 preferred_element_type=f32) + b2_ref[...]

    # residual + norm 2
    # TODO(synk): training-mode dropout (stochastic masking) not implemented; this
    # kernel uses eval-mode identity semantics for all Dropout layers.
    x2 = layer_norm(x1 + ff, g2_ref[...], be2_ref[...])
    o_ref[...] = x2.astype(o_ref.dtype)


def prepare_params(params, *, key_dim, matmul_dtype=jnp.float32):
    """One-time (parameter-load-time) re-layout of the torch-shaped params.

    - Fuses Wq/Wk/Wv into a single (D, 2*H*dk + H*dv) weight and the biases into
      one (1, 2*H*dk + H*dv) bias so the kernel issues ONE QKV matmul.
    - Folds the 1/sqrt(key_dim) softmax scale into Wq and bq.
    - Casts matmul weights to `matmul_dtype` (bf16 is valid on v5e/v6e/v7x);
      biases / norm params stay f32 (added to f32 accumulators).
    """
    scale = jnp.float32(1.0 / math.sqrt(key_dim))
    wqkv = jnp.concatenate([params["wq"] * scale, params["wk"], params["wv"]], axis=1)
    bqkv = jnp.concatenate([params["bq"] * scale, params["bk"], params["bv"]], axis=1)
    return {
        "wqkv": wqkv.astype(matmul_dtype),
        "bqkv": bqkv.astype(jnp.float32),
        "wo": params["wo"].astype(matmul_dtype),
        "bo": params["bo"].astype(jnp.float32),
        "g1": params["g1"], "be1": params["be1"],
        "g2": params["g2"], "be2": params["be2"],
        "w1": params["w1"].astype(matmul_dtype), "b1": params["b1"],
        "w2": params["w2"].astype(matmul_dtype), "b2": params["b2"],
    }


def encoder_block_forward(x, pad_mask, prepped, *, n_heads, key_dim, value_dim,
                          matmul_dtype=jnp.float32):
    """x: (B, S, D) float32; pad_mask: (B, S) with 1 = valid token, 0 = pad.

    `prepped` is the output of prepare_params (computed once, not per call).
    """
    B, S, D = x.shape
    N = B * S
    x2d = x.reshape(N, D)

    # Combined additive mask (N, N): 0 where query & key are in the same batch AND
    # the key token is valid; -1e9 otherwise.  This is what lets the kernel fold
    # the batch dim into the matmul M dimension for the score / AV matmuls.
    bidx = jnp.arange(N, dtype=jnp.int32) // S
    same_batch = bidx[:, None] == bidx[None, :]
    key_valid = pad_mask.reshape(N) > 0
    mask_nn = jnp.where(same_batch & key_valid[None, :], 0.0, -1e9).astype(jnp.float32)

    kernel = functools.partial(
        _encoder_block_kernel,
        n_heads=n_heads, key_dim=key_dim, value_dim=value_dim,
        matmul_dtype=matmul_dtype,
    )

    # Single grid-less invocation: every operand is a full-array VMEM block and
    # there is zero per-step pipeline overhead.  (Scaling note: on v7x add a
    # leading 'parallel' token-tile grid axis so both TensorCores get work, with
    # tile sizes re-derived for its 64 MiB VMEM.)
    out2d = pl.pallas_call(
        kernel,
        out_shape=jax.ShapeDtypeStruct((N, D), x.dtype),
    )(
        x2d, mask_nn,
        prepped["wqkv"], prepped["bqkv"], prepped["wo"], prepped["bo"],
        prepped["g1"], prepped["be1"], prepped["g2"], prepped["be2"],
        prepped["w1"], prepped["b1"], prepped["w2"], prepped["b2"],
    )
    return out2d.reshape(B, S, D)


def make_params(key, model_dim, key_dim, value_dim, n_heads):
    """Deterministic synthetic parameters (same shapes as the torch module)."""
    D = model_dim
    Hk = n_heads * key_dim
    Hv = n_heads * value_dim
    ks = jax.random.split(key, 8)
    s = 0.1  # small init scale
    return {
        # attention projections (stored [in, out])
        "wq": s * jax.random.normal(ks[0], (D, Hk), jnp.float32),
        "bq": jnp.zeros((1, Hk), jnp.float32),
        "wk": s * jax.random.normal(ks[1], (D, Hk), jnp.float32),
        "bk": jnp.zeros((1, Hk), jnp.float32),
        "wv": s * jax.random.normal(ks[2], (D, Hv), jnp.float32),
        "bv": jnp.zeros((1, Hv), jnp.float32),
        "wo": s * jax.random.normal(ks[3], (Hv, D), jnp.float32),
        "bo": jnp.zeros((1, D), jnp.float32),
        # layer norms
        "g1": jnp.ones((1, D), jnp.float32),
        "be1": jnp.zeros((1, D), jnp.float32),
        "g2": jnp.ones((1, D), jnp.float32),
        "be2": jnp.zeros((1, D), jnp.float32),
        # feed-forward
        "w1": s * jax.random.normal(ks[4], (D, 4 * D), jnp.float32),
        "b1": 0.01 * jax.random.normal(ks[5], (1, 4 * D), jnp.float32),
        "w2": s * jax.random.normal(ks[6], (4 * D, D), jnp.float32),
        "b2": 0.01 * jax.random.normal(ks[7], (1, D), jnp.float32),
    }


def reference_forward(x, pad_mask, params, *, n_heads, key_dim, value_dim,
                      matmul_dtype=jnp.float32, fold_scale=False):
    """Pure-JAX reference of the same math (eval-mode torch module).

    `matmul_dtype` rounds matmul operands like the kernel (f32 accumulation).
    `fold_scale=True` additionally pre-scales Wq/bq by 1/sqrt(key_dim) BEFORE the
    dtype cast, exactly mirroring prepare_params — used for the tight bf16 check
    where operand rounding must match bit-for-bit.
    """
    B, S, D = x.shape
    f32 = jnp.float32
    md = matmul_dtype
    scale = 1.0 / math.sqrt(key_dim)

    def mm(a, b):
        return jnp.einsum("...ij,jk->...ik", a.astype(md), b.astype(md),
                          preferred_element_type=f32)

    if fold_scale:
        q = mm(x, params["wq"] * scale) + params["bq"] * scale
    else:
        q = mm(x, params["wq"]) + params["bq"]
    k = mm(x, params["wk"]) + params["bk"]
    v = mm(x, params["wv"]) + params["bv"]
    q = q.reshape(B, S, n_heads, key_dim).transpose(0, 2, 1, 3)
    k = k.reshape(B, S, n_heads, key_dim).transpose(0, 2, 1, 3)
    v = v.reshape(B, S, n_heads, value_dim).transpose(0, 2, 1, 3)
    s = jnp.einsum("bhqd,bhkd->bhqk", q.astype(md), k.astype(md),
                   preferred_element_type=f32)
    if not fold_scale:
        s = s * scale
    m = pad_mask[:, None, None, :].astype(f32)
    s = jnp.where(m > 0, s, -1e9)
    p = jax.nn.softmax(s, axis=-1)
    o = jnp.einsum("bhqk,bhkd->bhqd", p.astype(md), v.astype(md),
                   preferred_element_type=f32)
    o = o.transpose(0, 2, 1, 3).reshape(B, S, -1)
    attn = mm(o, params["wo"]) + params["bo"]

    def ln(y, g, b, eps=1e-5):
        mu = jnp.mean(y, -1, keepdims=True)
        var = jnp.mean((y - mu) ** 2, -1, keepdims=True)
        return (y - mu) / jnp.sqrt(var + eps) * g + b

    x1 = ln(x.astype(f32) + attn, params["g1"], params["be1"])
    h1 = mm(x1, params["w1"]) + params["b1"]
    h1 = 0.5 * h1 * (1.0 + lax.erf(h1 / math.sqrt(2.0)))
    ff = mm(h1, params["w2"]) + params["b2"]
    return ln(x1 + ff, params["g2"], params["be2"])


if __name__ == "__main__":
    # Module config: key_dim=8, value_dim=8, model_dim=32, n_heads=4, max_len=16
    # (max_len only sizes the internal causal-mask buffer; unused since casual=False)
    B, S, D = 2, 8, 32
    n_heads, key_dim, value_dim = 4, 8, 8

    root = jax.random.PRNGKey(0)
    k_x, k_p = jax.random.split(root)
    x = jax.random.normal(k_x, (B, S, D), jnp.float32)
    pad_mask = jnp.ones((B, S), jnp.float32)   # all tokens valid (pad_mask=None case)
    params = make_params(k_p, D, key_dim, value_dim, n_heads)

    # One-time parameter prep (hoisted out of the per-call forward).
    prep_f32 = prepare_params(params, key_dim=key_dim, matmul_dtype=jnp.float32)
    prep_bf16 = prepare_params(params, key_dim=key_dim, matmul_dtype=jnp.bfloat16)

    fwd_f32 = jax.jit(functools.partial(
        encoder_block_forward, n_heads=n_heads, key_dim=key_dim,
        value_dim=value_dim, matmul_dtype=jnp.float32))
    fwd_bf16 = jax.jit(functools.partial(
        encoder_block_forward, n_heads=n_heads, key_dim=key_dim,
        value_dim=value_dim, matmul_dtype=jnp.bfloat16))

    # ---- f32 path vs faithful (torch-semantics) reference.  The approx softmax
    # reciprocal is gone; remaining slack only covers possible differences in how
    # default-precision f32 matmuls are emulated on the MXU by Mosaic vs. the XLA
    # reference (pass count), which is outside this kernel's control.
    out_f32 = jax.block_until_ready(fwd_f32(x, pad_mask, prep_f32))
    ref_f32 = reference_forward(x, pad_mask, params, n_heads=n_heads,
                                key_dim=key_dim, value_dim=value_dim)
    assert out_f32.shape == (B, S, D)
    assert jnp.allclose(out_f32, ref_f32, atol=1e-2, rtol=1e-2), (
        "f32 kernel mismatch vs JAX reference: max |diff| = "
        f"{jnp.max(jnp.abs(out_f32 - ref_f32))}")

    # ---- f32 path with real padding (exercises the additive key/cross-batch mask).
    pad_mask2 = pad_mask.at[1, S - 2:].set(0.0)
    out_pad = jax.block_until_ready(fwd_f32(x, pad_mask2, prep_f32))
    ref_pad = reference_forward(x, pad_mask2, params, n_heads=n_heads,
                                key_dim=key_dim, value_dim=value_dim)
    assert jnp.allclose(out_pad, ref_pad, atol=1e-2, rtol=1e-2), (
        "f32 kernel (padded) mismatch vs JAX reference: max |diff| = "
        f"{jnp.max(jnp.abs(out_pad - ref_pad))}")

    # ---- bf16 MXU operands (valid on v5e/v6e/v7x) vs an operand-rounding-matched
    # reference (fold_scale=True mirrors prepare_params).  bf16xbf16 products are
    # exact in f32, so this check is tight.
    out_bf16 = jax.block_until_ready(fwd_bf16(x, pad_mask, prep_bf16))
    ref_bf16 = reference_forward(x, pad_mask, params, n_heads=n_heads,
                                 key_dim=key_dim, value_dim=value_dim,
                                 matmul_dtype=jnp.bfloat16, fold_scale=True)
    assert out_bf16.shape == (B, S, D)
    assert jnp.allclose(out_bf16, ref_bf16, atol=2e-3, rtol=2e-3), (
        "bf16 kernel mismatch vs operand-matched JAX reference: max |diff| = "
        f"{jnp.max(jnp.abs(out_bf16 - ref_bf16))}")

    print("KERNEL_OK")
</pallas_src>

<mosaic_0001>
module attributes {stable_mosaic.version = 11 : i64} {
  func.func @_encoder_block_kernel(%arg0: memref<16x32xf32, #tpu.memory_space<vmem>>, %arg1: memref<16x16xf32, #tpu.memory_space<vmem>>, %arg2: memref<32x96xf32, #tpu.memory_space<vmem>>, %arg3: memref<1x96xf32, #tpu.memory_space<vmem>>, %arg4: memref<32x32xf32, #tpu.memory_space<vmem>>, %arg5: memref<1x32xf32, #tpu.memory_space<vmem>>, %arg6: memref<1x32xf32, #tpu.memory_space<vmem>>, %arg7: memref<1x32xf32, #tpu.memory_space<vmem>>, %arg8: memref<1x32xf32, #tpu.memory_space<vmem>>, %arg9: memref<1x32xf32, #tpu.memory_space<vmem>>, %arg10: memref<32x128xf32, #tpu.memory_space<vmem>>, %arg11: memref<1x128xf32, #tpu.memory_space<vmem>>, %arg12: memref<128x32xf32, #tpu.memory_space<vmem>>, %arg13: memref<1x32xf32, #tpu.memory_space<vmem>>, %arg14: memref<16x32xf32, #tpu.memory_space<vmem>>) attributes {dimension_semantics = [], scalar_prefetch = 0 : i64, scratch_operands = 0 : i64, tpu.core_type = #tpu.core_type<tc>} {
    %c0 = arith.constant 0 : index
    %c0_0 = arith.constant 0 : index
    %0 = vector.load %arg0[%c0, %c0_0] : memref<16x32xf32, #tpu.memory_space<vmem>>, vector<16x32xf32>
    %c0_1 = arith.constant 0 : index
    %c0_2 = arith.constant 0 : index
    %1 = vector.load %arg1[%c0_1, %c0_2] : memref<16x16xf32, #tpu.memory_space<vmem>>, vector<16x16xf32>
    %c0_3 = arith.constant 0 : index
    %c0_4 = arith.constant 0 : index
    %2 = vector.load %arg2[%c0_3, %c0_4] : memref<32x96xf32, #tpu.memory_space<vmem>>, vector<32x96xf32>
    %cst = arith.constant dense<0.000000e+00> : vector<16x96xf32>
    %3 = tpu.matmul %0, %2, %cst {dimension_numbers = #tpu.dot_dimension_numbers<[1], [0], [0], [1], [0, 0, 1, 1], [], []>} : vector<16x32xf32>, vector<32x96xf32>, vector<16x96xf32> -> vector<16x96xf32>
    %c0_5 = arith.constant 0 : index
    %c0_6 = arith.constant 0 : index
    %4 = vector.load %arg3[%c0_5, %c0_6] : memref<1x96xf32, #tpu.memory_space<vmem>>, vector<1x96xf32>
    %5 = vector.broadcast %4 : vector<1x96xf32> to vector<16x96xf32>
    %6 = arith.addf %3, %5 : vector<16x96xf32>
    %7 = vector.extract_strided_slice %6 {offsets = [0, 0], sizes = [16, 8], strides = [1, 1]} : vector<16x96xf32> to vector<16x8xf32>
    %8 = vector.extract_strided_slice %6 {offsets = [0, 32], sizes = [16, 8], strides = [1, 1]} : vector<16x96xf32> to vector<16x8xf32>
    %9 = vector.extract_strided_slice %6 {offsets = [0, 64], sizes = [16, 8], strides = [1, 1]} : vector<16x96xf32> to vector<16x8xf32>
    %cst_7 = arith.constant dense<0.000000e+00> : vector<16x16xf32>
    %10 = tpu.matmul %7, %8, %cst_7 {dimension_numbers = #tpu.dot_dimension_numbers<[1], [1], [0], [0], [0, 0, 1, 0], [], []>} : vector<16x8xf32>, vector<16x8xf32>, vector<16x16xf32> -> vector<16x16xf32>
    %11 = arith.addf %10, %1 : vector<16x16xf32>
    %cst_8 = arith.constant dense<0xFF800000> : vector<16xf32>
    %12 = vector.multi_reduction <maximumf>, %11, %cst_8 [1] : vector<16x16xf32> to vector<16xf32>
    %13 = vector.shape_cast %12 : vector<16xf32> to vector<16x1xf32>
    %14 = vector.broadcast %13 : vector<16x1xf32> to vector<16x16xf32>
    %15 = arith.subf %11, %14 : vector<16x16xf32>
    %16 = math.exp %15 : vector<16x16xf32>
    %cst_9 = arith.constant dense<0.000000e+00> : vector<16xf32>
    %17 = vector.multi_reduction <add>, %16, %cst_9 [1] : vector<16x16xf32> to vector<16xf32>
    %18 = vector.shape_cast %17 : vector<16xf32> to vector<16x1xf32>
    %19 = vector.broadcast %18 : vector<16x1xf32> to vector<16x16xf32>
    %20 = arith.divf %16, %19 : vector<16x16xf32>
    %cst_10 = arith.constant dense<0.000000e+00> : vector<16x8xf32>
    %21 = tpu.matmul %20, %9, %cst_10 {dimension_numbers = #tpu.dot_dimension_numbers<[1], [0], [0], [1], [0, 0, 1, 1], [], []>} : vector<16x16xf32>, vector<16x8xf32>, vector<16x8xf32> -> vector<16x8xf32>
    %22 = vector.extract_strided_slice %6 {offsets = [0, 8], sizes = [16, 8], strides = [1, 1]} : vector<16x96xf32> to vector<16x8xf32>
    %23 = vector.extract_strided_slice %6 {offsets = [0, 40], sizes = [16, 8], strides = [1, 1]} : vector<16x96xf32> to vector<16x8xf32>
    %24 = vector.extract_strided_slice %6 {offsets = [0, 72], sizes = [16, 8], strides = [1, 1]} : vector<16x96xf32> to vector<16x8xf32>
    %cst_11 = arith.constant dense<0.000000e+00> : vector<16x16xf32>
    %25 = tpu.matmul %22, %23, %cst_11 {dimension_numbers = #tpu.dot_dimension_numbers<[1], [1], [0], [0], [0, 0, 1, 0], [], []>} : vector<16x8xf32>, vector<16x8xf32>, vector<16x16xf32> -> vector<16x16xf32>
    %26 = arith.addf %25, %1 : vector<16x16xf32>
    %cst_12 = arith.constant dense<0xFF800000> : vector<16xf32>
    %27 = vector.multi_reduction <maximumf>, %26, %cst_12 [1] : vector<16x16xf32> to vector<16xf32>
    %28 = vector.shape_cast %27 : vector<16xf32> to vector<16x1xf32>
    %29 = vector.broadcast %28 : vector<16x1xf32> to vector<16x16xf32>
    %30 = arith.subf %26, %29 : vector<16x16xf32>
    %31 = math.exp %30 : vector<16x16xf32>
    %cst_13 = arith.constant dense<0.000000e+00> : vector<16xf32>
    %32 = vector.multi_reduction <add>, %31, %cst_13 [1] : vector<16x16xf32> to vector<16xf32>
    %33 = vector.shape_cast %32 : vector<16xf32> to vector<16x1xf32>
    %34 = vector.broadcast %33 : vector<16x1xf32> to vector<16x16xf32>
    %35 = arith.divf %31, %34 : vector<16x16xf32>
    %cst_14 = arith.constant dense<0.000000e+00> : vector<16x8xf32>
    %36 = tpu.matmul %35, %24, %cst_14 {dimension_numbers = #tpu.dot_dimension_numbers<[1], [0], [0], [1], [0, 0, 1, 1], [], []>} : vector<16x16xf32>, vector<16x8xf32>, vector<16x8xf32> -> vector<16x8xf32>
    %37 = vector.extract_strided_slice %6 {offsets = [0, 16], sizes = [16, 8], strides = [1, 1]} : vector<16x96xf32> to vector<16x8xf32>
    %38 = vector.extract_strided_slice %6 {offsets = [0, 48], sizes = [16, 8], strides = [1, 1]} : vector<16x96xf32> to vector<16x8xf32>
    %39 = vector.extract_strided_slice %6 {offsets = [0, 80], sizes = [16, 8], strides = [1, 1]} : vector<16x96xf32> to vector<16x8xf32>
    %cst_15 = arith.constant dense<0.000000e+00> : vector<16x16xf32>
    %40 = tpu.matmul %37, %38, %cst_15 {dimension_numbers = #tpu.dot_dimension_numbers<[1], [1], [0], [0], [0, 0, 1, 0], [], []>} : vector<16x8xf32>, vector<16x8xf32>, vector<16x16xf32> -> vector<16x16xf32>
    %41 = arith.addf %40, %1 : vector<16x16xf32>
    %cst_16 = arith.constant dense<0xFF800000> : vector<16xf32>
    %42 = vector.multi_reduction <maximumf>, %41, %cst_16 [1] : vector<16x16xf32> to vector<16xf32>
    %43 = vector.shape_cast %42 : vector<16xf32> to vector<16x1xf32>
    %44 = vector.broadcast %43 : vector<16x1xf32> to vector<16x16xf32>
    %45 = arith.subf %41, %44 : vector<16x16xf32>
    %46 = math.exp %45 : vector<16x16xf32>
    %cst_17 = arith.constant dense<0.000000e+00> : vector<16xf32>
    %47 = vector.multi_reduction <add>, %46, %cst_17 [1] : vector<16x16xf32> to vector<16xf32>
    %48 = vector.shape_cast %47 : vector<16xf32> to vector<16x1xf32>
    %49 = vector.broadcast %48 : vector<16x1xf32> to vector<16x16xf32>
    %50 = arith.divf %46, %49 : vector<16x16xf32>
    %cst_18 = arith.constant dense<0.000000e+00> : vector<16x8xf32>
    %51 = tpu.matmul %50, %39, %cst_18 {dimension_numbers = #tpu.dot_dimension_numbers<[1], [0], [0], [1], [0, 0, 1, 1], [], []>} : vector<16x16xf32>, vector<16x8xf32>, vector<16x8xf32> -> vector<16x8xf32>
    %52 = vector.extract_strided_slice %6 {offsets = [0, 24], sizes = [16, 8], strides = [1, 1]} : vector<16x96xf32> to vector<16x8xf32>
    %53 = vector.extract_strided_slice %6 {offsets = [0, 56], sizes = [16, 8], strides = [1, 1]} : vector<16x96xf32> to vector<16x8xf32>
    %54 = vector.extract_strided_slice %6 {offsets = [0, 88], sizes = [16, 8], strides = [1, 1]} : vector<16x96xf32> to vector<16x8xf32>
    %cst_19 = arith.constant dense<0.000000e+00> : vector<16x16xf32>
    %55 = tpu.matmul %52, %53, %cst_19 {dimension_numbers = #tpu.dot_dimension_numbers<[1], [1], [0], [0], [0, 0, 1, 0], [], []>} : vector<16x8xf32>, vector<16x8xf32>, vector<16x16xf32> -> vector<16x16xf32>
    %56 = arith.addf %55, %1 : vector<16x16xf32>
    %cst_20 = arith.constant dense<0xFF800000> : vector<16xf32>
    %57 = vector.multi_reduction <maximumf>, %56, %cst_20 [1] : vector<16x16xf32> to vector<16xf32>
    %58 = vector.shape_cast %57 : vector<16xf32> to vector<16x1xf32>
    %59 = vector.broadcast %58 : vector<16x1xf32> to vector<16x16xf32>
    %60 = arith.subf %56, %59 : vector<16x16xf32>
    %61 = math.exp %60 : vector<16x16xf32>
    %cst_21 = arith.constant dense<0.000000e+00> : vector<16xf32>
    %62 = vector.multi_reduction <add>, %61, %cst_21 [1] : vector<16x16xf32> to vector<16xf32>
    %63 = vector.shape_cast %62 : vector<16xf32> to vector<16x1xf32>
    %64 = vector.broadcast %63 : vector<16x1xf32> to vector<16x16xf32>
    %65 = arith.divf %61, %64 : vector<16x16xf32>
    %cst_22 = arith.constant dense<0.000000e+00> : vector<16x8xf32>
    %66 = tpu.matmul %65, %54, %cst_22 {dimension_numbers = #tpu.dot_dimension_numbers<[1], [0], [0], [1], [0, 0, 1, 1], [], []>} : vector<16x16xf32>, vector<16x8xf32>, vector<16x8xf32> -> vector<16x8xf32>
    %67 = tpu.concatenate %21, %36, %51, %66 in 1 : vector<16x8xf32>, vector<16x8xf32>, vector<16x8xf32>, vector<16x8xf32> -> vector<16x32xf32>
    %c0_23 = arith.constant 0 : index
    %c0_24 = arith.constant 0 : index
    %68 = vector.load %arg4[%c0_23, %c0_24] : memref<32x32xf32, #tpu.memory_space<vmem>>, vector<32x32xf32>
    %cst_25 = arith.constant dense<0.000000e+00> : vector<16x32xf32>
    %69 = tpu.matmul %67, %68, %cst_25 {dimension_numbers = #tpu.dot_dimension_numbers<[1], [0], [0], [1], [0, 0, 1, 1], [], []>} : vector<16x32xf32>, vector<32x32xf32>, vector<16x32xf32> -> vector<16x32xf32>
    %c0_26 = arith.constant 0 : index
    %c0_27 = arith.constant 0 : index
    %70 = vector.load %arg5[%c0_26, %c0_27] : memref<1x32xf32, #tpu.memory_space<vmem>>, vector<1x32xf32>
    %71 = vector.broadcast %70 : vector<1x32xf32> to vector<16x32xf32>
    %72 = arith.addf %69, %71 : vector<16x32xf32>
    %73 = arith.addf %0, %72 : vector<16x32xf32>
    %c0_28 = arith.constant 0 : index
    %c0_29 = arith.constant 0 : index
    %74 = vector.load %arg6[%c0_28, %c0_29] : memref<1x32xf32, #tpu.memory_space<vmem>>, vector<1x32xf32>
    %c0_30 = arith.constant 0 : index
    %c0_31 = arith.constant 0 : index
    %75 = vector.load %arg7[%c0_30, %c0_31] : memref<1x32xf32, #tpu.memory_space<vmem>>, vector<1x32xf32>
    %cst_32 = arith.constant dense<0.000000e+00> : vector<16xf32>
    %76 = vector.multi_reduction <add>, %73, %cst_32 [1] : vector<16x32xf32> to vector<16xf32>
    %77 = vector.shape_cast %76 : vector<16xf32> to vector<16x1xf32>
    %cst_33 = arith.constant 3.200000e+01 : f32
    %78 = vector.broadcast %cst_33 : f32 to vector<16x1xf32>
    %79 = arith.divf %77, %78 : vector<16x1xf32>
    %80 = vector.broadcast %79 : vector<16x1xf32> to vector<16x32xf32>
    %81 = arith.subf %73, %80 : vector<16x32xf32>
    %82 = arith.mulf %81, %81 : vector<16x32xf32>
    %cst_34 = arith.constant dense<0.000000e+00> : vector<16xf32>
    %83 = vector.multi_reduction <add>, %82, %cst_34 [1] : vector<16x32xf32> to vector<16xf32>
    %84 = vector.shape_cast %83 : vector<16xf32> to vector<16x1xf32>
    %cst_35 = arith.constant 3.200000e+01 : f32
    %85 = vector.broadcast %cst_35 : f32 to vector<16x1xf32>
    %86 = arith.divf %84, %85 : vector<16x1xf32>
    %87 = vector.broadcast %79 : vector<16x1xf32> to vector<16x32xf32>
    %88 = arith.subf %73, %87 : vector<16x32xf32>
    %cst_36 = arith.constant 9.99999974E-6 : f32
    %89 = vector.broadcast %cst_36 : f32 to vector<16x1xf32>
    %90 = arith.addf %86, %89 : vector<16x1xf32>
    %91 = math.rsqrt %90 : vector<16x1xf32>
    %92 = vector.broadcast %91 : vector<16x1xf32> to vector<16x32xf32>
    %93 = arith.mulf %88, %92 : vector<16x32xf32>
    %94 = vector.broadcast %74 : vector<1x32xf32> to vector<16x32xf32>
    %95 = arith.mulf %93, %94 : vector<16x32xf32>
    %96 = vector.broadcast %75 : vector<1x32xf32> to vector<16x32xf32>
    %97 = arith.addf %95, %96 : vector<16x32xf32>
    %c0_37 = arith.constant 0 : index
    %c0_38 = arith.constant 0 : index
    %98 = vector.load %arg10[%c0_37, %c0_38] : memref<32x128xf32, #tpu.memory_space<vmem>>, vector<32x128xf32>
    %cst_39 = arith.constant dense<0.000000e+00> : vector<16x128xf32>
    %99 = tpu.matmul %97, %98, %cst_39 {dimension_numbers = #tpu.dot_dimension_numbers<[1], [0], [0], [1], [0, 0, 1, 1], [], []>} : vector<16x32xf32>, vector<32x128xf32>, vector<16x128xf32> -> vector<16x128xf32>
    %c0_40 = arith.constant 0 : index
    %c0_41 = arith.constant 0 : index
    %100 = vector.load %arg11[%c0_40, %c0_41] : memref<1x128xf32, #tpu.memory_space<vmem>>, vector<1x128xf32>
    %101 = vector.broadcast %100 : vector<1x128xf32> to vector<16x128xf32>
    %102 = arith.addf %99, %101 : vector<16x128xf32>
    %cst_42 = arith.constant 5.000000e-01 : f32
    %103 = vector.broadcast %cst_42 : f32 to vector<16x128xf32>
    %104 = arith.mulf %103, %102 : vector<16x128xf32>
    %cst_43 = arith.constant 0.707106769 : f32
    %105 = vector.broadcast %cst_43 : f32 to vector<16x128xf32>
    %106 = arith.mulf %102, %105 : vector<16x128xf32>
    %107 = math.erf %106 : vector<16x128xf32>
    %cst_44 = arith.constant 1.000000e+00 : f32
    %108 = vector.broadcast %cst_44 : f32 to vector<16x128xf32>
    %109 = arith.addf %108, %107 : vector<16x128xf32>
    %110 = arith.mulf %104, %109 : vector<16x128xf32>
    %c0_45 = arith.constant 0 : index
    %c0_46 = arith.constant 0 : index
    %111 = vector.load %arg12[%c0_45, %c0_46] : memref<128x32xf32, #tpu.memory_space<vmem>>, vector<128x32xf32>
    %cst_47 = arith.constant dense<0.000000e+00> : vector<16x32xf32>
    %112 = tpu.matmul %110, %111, %cst_47 {dimension_numbers = #tpu.dot_dimension_numbers<[1], [0], [0], [1], [0, 0, 1, 1], [], []>} : vector<16x128xf32>, vector<128x32xf32>, vector<16x32xf32> -> vector<16x32xf32>
    %c0_48 = arith.constant 0 : index
    %c0_49 = arith.constant 0 : index
    %113 = vector.load %arg13[%c0_48, %c0_49] : memref<1x32xf32, #tpu.memory_space<vmem>>, vector<1x32xf32>
    %114 = vector.broadcast %113 : vector<1x32xf32> to vector<16x32xf32>
    %115 = arith.addf %112, %114 : vector<16x32xf32>
    %116 = arith.addf %97, %115 : vector<16x32xf32>
    %c0_50 = arith.constant 0 : index
    %c0_51 = arith.constant 0 : index
    %117 = vector.load %arg8[%c0_50, %c0_51] : memref<1x32xf32, #tpu.memory_space<vmem>>, vector<1x32xf32>
    %c0_52 = arith.constant 0 : index
    %c0_53 = arith.constant 0 : index
    %118 = vector.load %arg9[%c0_52, %c0_53] : memref<1x32xf32, #tpu.memory_space<vmem>>, vector<1x32xf32>
    %cst_54 = arith.constant dense<0.000000e+00> : vector<16xf32>
    %119 = vector.multi_reduction <add>, %116, %cst_54 [1] : vector<16x32xf32> to vector<16xf32>
    %120 = vector.shape_cast %119 : vector<16xf32> to vector<16x1xf32>
    %cst_55 = arith.constant 3.200000e+01 : f32
    %121 = vector.broadcast %cst_55 : f32 to vector<16x1xf32>
    %122 = arith.divf %120, %121 : vector<16x1xf32>
    %123 = vector.broadcast %122 : vector<16x1xf32> to vector<16x32xf32>
    %124 = arith.subf %116, %123 : vector<16x32xf32>
    %125 = arith.mulf %124, %124 : vector<16x32xf32>
    %cst_56 = arith.constant dense<0.000000e+00> : vector<16xf32>
    %126 = vector.multi_reduction <add>, %125, %cst_56 [1] : vector<16x32xf32> to vector<16xf32>
    %127 = vector.shape_cast %126 : vector<16xf32> to vector<16x1xf32>
    %cst_57 = arith.constant 3.200000e+01 : f32
    %128 = vector.broadcast %cst_57 : f32 to vector<16x1xf32>
    %129 = arith.divf %127, %128 : vector<16x1xf32>
    %130 = vector.broadcast %122 : vector<16x1xf32> to vector<16x32xf32>
    %131 = arith.subf %116, %130 : vector<16x32xf32>
    %cst_58 = arith.constant 9.99999974E-6 : f32
    %132 = vector.broadcast %cst_58 : f32 to vector<16x1xf32>
    %133 = arith.addf %129, %132 : vector<16x1xf32>
    %134 = math.rsqrt %133 : vector<16x1xf32>
    %135 = vector.broadcast %134 : vector<16x1xf32> to vector<16x32xf32>
    %136 = arith.mulf %131, %135 : vector<16x32xf32>
    %137 = vector.broadcast %117 : vector<1x32xf32> to vector<16x32xf32>
    %138 = arith.mulf %136, %137 : vector<16x32xf32>
    %139 = vector.broadcast %118 : vector<1x32xf32> to vector<16x32xf32>
    %140 = arith.addf %138, %139 : vector<16x32xf32>
    %c0_59 = arith.constant 0 : index
    %c0_60 = arith.constant 0 : index
    %141 = vector.load %arg14[%c0_59, %c0_60] : memref<16x32xf32, #tpu.memory_space<vmem>>, vector<16x32xf32>
    tpu.vector_store %arg14[%c0_59, %c0_60], %140 {strides = array<i32>} : memref<16x32xf32, #tpu.memory_space<vmem>>, vector<16x32xf32>,
    return
  }
}

</mosaic_0001>

<llo_original>
// kernel: encoder_block_forward.1
$region0: #{encoder_block_forward.1}
  #allocation0 [shape = 'u32[]', space=smem, size = 0x4, offset = 0x4, fixed_abs, tag = 'smem constant byte address 0x4 - core index']
  #allocation1 [shape = 'u32[72,128]{1,0:T(1,128)}', space=vmem, size = 0x9000, scoped, tag = 'internal scratch']
  %s0 = inlined_call_operand.vmem [shape: f32[16,32], index: 0, kind: input, shape index: {}]
  %s1 = inlined_call_operand.vmem [shape: f32[16,16], index: 1, kind: input, shape index: {}]
  %s2 = inlined_call_operand.vmem [shape: f32[32,96], index: 2, kind: input, shape index: {}]
  %s3 = inlined_call_operand.vmem [shape: f32[1,96], index: 3, kind: input, shape index: {}]
  %s4 = inlined_call_operand.vmem [shape: f32[32,32], index: 4, kind: input, shape index: {}]
  %s5 = inlined_call_operand.vmem [shape: f32[1,32], index: 5, kind: input, shape index: {}]
  %s6 = inlined_call_operand.vmem [shape: f32[1,32], index: 6, kind: input, shape index: {}]
  %s7 = inlined_call_operand.vmem [shape: f32[1,32], index: 7, kind: input, shape index: {}]
  %s8 = inlined_call_operand.vmem [shape: f32[1,32], index: 8, kind: input, shape index: {}]
  %s9 = inlined_call_operand.vmem [shape: f32[1,32], index: 9, kind: input, shape index: {}]
  %s10 = inlined_call_operand.vmem [shape: f32[32,128], index: 10, kind: input, shape index: {}]
  %s11 = inlined_call_operand.vmem [shape: f32[1,128], index: 11, kind: input, shape index: {}]
  %s12 = inlined_call_operand.vmem [shape: f32[128,32], index: 12, kind: input, shape index: {}]
  %s13 = inlined_call_operand.vmem [shape: f32[1,32], index: 13, kind: input, shape index: {}]
  %s14 = inlined_call_operand.hbm [shape: f32[16,32], index: 14, kind: output, shape index: {}]
  %s15 = sld [smem:[#allocation0]]
  $region66: #{encoder_block_forward.1} parent=0
    _
  %s17 = ssub.s32 1, %s15
  %s18 = scalar_select 0, %s17, %s15
  $region1: #{encoder_block_forward.1} parent=0
    #allocation2 [shape = 'u8[8192]{0}', space=vmem, size = 0x2000, scoped, tag = 'output window, operand 0, single buffered']
    #allocation3 [shape = 's32[1]{0}', space=sflag, size = 0x4, scoped, tag = 'scoped memory for encoder_block_forward.1']
    %19 = vsyncpa [#allocation3], 0
    // Predicated region
    $region2: #{encoder_block_forward.1} parent=1 // pred_check
      _
    $region3: #{encoder_block_forward.1} parent=1 // pred_check_branch
      %21 = sbr.rel (0) target = $region5
    $region4: #{encoder_block_forward.1} parent=1 // pred_region
      _
    $region5: #{encoder_block_forward.1} parent=1 // pred_fallthru
      _
    // Predicated region
    $region6: #{encoder_block_forward.1} parent=1 // pred_check
      _
    $region7: #{encoder_block_forward.1} parent=1 // pred_check_branch
      %23 = sbr.rel (0) target = $region9
    $region8: #{encoder_block_forward.1} parent=1 // pred_region
      _
    $region9: #{encoder_block_forward.1} parent=1 // pred_fallthru
      _
    // Predicated region
    $region10: #{encoder_block_forward.1} parent=1 // pred_check
      _
    $region11: #{encoder_block_forward.1} parent=1 // pred_check_branch
      %25 = sbr.rel (0) target = $region13
    $region12: #{encoder_block_forward.1} parent=1 // pred_region
      _
    $region13: #{encoder_block_forward.1} parent=1 // pred_fallthru
      _
    // Predicated region
    $region14: #{encoder_block_forward.1} parent=1 // pred_check
      _
    $region15: #{encoder_block_forward.1} parent=1 // pred_check_branch
      %27 = sbr.rel (0) target = $region17
    $region16: #{encoder_block_forward.1} parent=1 // pred_region
      _
    $region17: #{encoder_block_forward.1} parent=1 // pred_fallthru
      _
    // Predicated region
    $region18: #{encoder_block_forward.1} parent=1 // pred_check
      _
    $region19: #{encoder_block_forward.1} parent=1 // pred_check_branch
      %29 = sbr.rel (0) target = $region21
    $region20: #{encoder_block_forward.1} parent=1 // pred_region
      _
    $region21: #{encoder_block_forward.1} parent=1 // pred_fallthru
      _
    // Predicated region
    $region22: #{encoder_block_forward.1} parent=1 // pred_check
      _
    $region23: #{encoder_block_forward.1} parent=1 // pred_check_branch
      %31 = sbr.rel (0) target = $region25
    $region24: #{encoder_block_forward.1} parent=1 // pred_region
      _
    $region25: #{encoder_block_forward.1} parent=1 // pred_fallthru
      _
    // Predicated region
    $region26: #{encoder_block_forward.1} parent=1 // pred_check
      _
    $region27: #{encoder_block_forward.1} parent=1 // pred_check_branch
      %33 = sbr.rel (0) target = $region29
    $region28: #{encoder_block_forward.1} parent=1 // pred_region
      _
    $region29: #{encoder_block_forward.1} parent=1 // pred_fallthru
      _
    // Predicated region
    $region30: #{encoder_block_forward.1} parent=1 // pred_check
      _
    $region31: #{encoder_block_forward.1} parent=1 // pred_check_branch
      %35 = sbr.rel (0) target = $region33
    $region32: #{encoder_block_forward.1} parent=1 // pred_region
      _
    $region33: #{encoder_block_forward.1} parent=1 // pred_fallthru
      _
    // Predicated region
    $region34: #{encoder_block_forward.1} parent=1 // pred_check
      _
    $region35: #{encoder_block_forward.1} parent=1 // pred_check_branch
      %37 = sbr.rel (0) target = $region37
    $region36: #{encoder_block_forward.1} parent=1 // pred_region
      _
    $region37: #{encoder_block_forward.1} parent=1 // pred_fallthru
      _
    // Predicated region
    $region38: #{encoder_block_forward.1} parent=1 // pred_check
      _
    $region39: #{encoder_block_forward.1} parent=1 // pred_check_branch
      %39 = sbr.rel (0) target = $region41
    $region40: #{encoder_block_forward.1} parent=1 // pred_region
      _
    $region41: #{encoder_block_forward.1} parent=1 // pred_fallthru
      _
    // Predicated region
    $region42: #{encoder_block_forward.1} parent=1 // pred_check
      _
    $region43: #{encoder_block_forward.1} parent=1 // pred_check_branch
      %41 = sbr.rel (0) target = $region45
    $region44: #{encoder_block_forward.1} parent=1 // pred_region
      _
    $region45: #{encoder_block_forward.1} parent=1 // pred_fallthru
      _
    // Predicated region
    $region46: #{encoder_block_forward.1} parent=1 // pred_check
      _
    $region47: #{encoder_block_forward.1} parent=1 // pred_check_branch
      %43 = sbr.rel (0) target = $region49
    $region48: #{encoder_block_forward.1} parent=1 // pred_region
      _
    $region49: #{encoder_block_forward.1} parent=1 // pred_fallthru
      _
    // Predicated region
    $region50: #{encoder_block_forward.1} parent=1 // pred_check
      _
    $region51: #{encoder_block_forward.1} parent=1 // pred_check_branch
      %45 = sbr.rel (0) target = $region53
    $region52: #{encoder_block_forward.1} parent=1 // pred_region
      _
    $region53: #{encoder_block_forward.1} parent=1 // pred_fallthru
      _
    // Predicated region
    $region54: #{encoder_block_forward.1} parent=1 // pred_check
      _
    $region55: #{encoder_block_forward.1} parent=1 // pred_check_branch
      %47 = sbr.rel (0) target = $region57
    $region56: #{encoder_block_forward.1} parent=1 // pred_region
      _
    $region57: #{encoder_block_forward.1} parent=1 // pred_fallthru
      _
    %v48 = vld [vmem:[%s0] sm:$0xff]
    %v49 = vld [vmem:[%s0 + $0x8] sm:$0xff]
    %v50 = vld [vmem:[%s1] sm:$0xff]
    %v51 = vld [vmem:[%s1 + $0x8] sm:$0xff]
    %v52 = vld [vmem:[%s2] sm:$0xff]
    %v53 = vld [vmem:[%s2 + $0x8] sm:$0xff]
    %v54 = vld [vmem:[%s2 + $0x10] sm:$0xff]
    %v55 = vld [vmem:[%s2 + $0x18] sm:$0xff]
    %v56 = vld [vmem:[%s3] sm:$0x1]
    %v58 = vperm.slane %v56, 0
    %vm60 = vcmask 261120
    %v62 = vsel %vm60, %v48, 0
    %v65 = vsel %vm60, %v49, 0
    %67 = vmatpush.msra.mxu0 0.0
    %68 = vmatpush.msra.mxu0 0.0
    %69 = vmatpush.msra.mxu0 0.0
    %70 = vmatpush.msra.mxu0 0.0
    %71 = vmatpush.msra.mxu0 0.0
    %72 = vmatpush.msra.mxu0 0.0
    %73 = vmatpush.msra.mxu0 0.0
    %74 = vmatpush.msra.mxu0 0.0
    %75 = vmatpush.msra.mxu0 0.0
    %76 = vmatpush.msra.mxu0 0.0
    %77 = vmatpush.msra.mxu0 0.0
    %78 = vmatpush.msra.mxu0 0.0
    %79 = vmatpush.msra.mxu0 %v55
    %80 = vmatpush.msra.mxu0 %v54
    %81 = vmatpush.msra.mxu0 %v53
    %82 = vmatpush.msra.mxu0 %v52
    %83 = vmatmul.f32.gmra.mxu0 %v62
    %v84 = vpop.f32.mrf.mxu0
    %v85 = vadd.f32 %v58, %v84
    %86 = vmatmul.f32.gmra.mxu0 %v65
    %v87 = vpop.f32.mrf.mxu0
    %v88 = vadd.f32 %v58, %v87
    %89 = vdwg.mxu0
    %92 = vrot.lane.b32.xlu0 %v85, 96
    %v93 = vpop.permute.xlu0 %92
    %94 = vrot.lane.b32.xlu0 %v88, 96
    %v95 = vpop.permute.xlu0 %94
    %vm96 = vcmask 64512
    %v97 = vsel %vm96, %v85, 0
    %v99 = vsel %vm96, %v88, 0
    %v101 = vsel %vm96, %v93, 0
    %v103 = vsel %vm96, %v95, 0
    %105 = vmatpush.xpose.msra.mxu0 0.0
    %106 = vmatpush.xpose.msra.mxu0 0.0
    %107 = vmatpush.xpose.msra.mxu0 0.0
    %108 = vmatpush.xpose.msra.mxu0 0.0
    %109 = vmatpush.xpose.msra.mxu0 0.0
    %110 = vmatpush.xpose.msra.mxu0 0.0
    %111 = vmatpush.xpose.msra.mxu0 0.0
    %112 = vmatpush.xpose.msra.mxu0 0.0
    %113 = vmatpush.xpose.msra.mxu0 0.0
    %114 = vmatpush.xpose.msra.mxu0 0.0
    %115 = vmatpush.xpose.msra.mxu0 0.0
    %116 = vmatpush.xpose.msra.mxu0 0.0
    %117 = vmatpush.xpose.msra.mxu0 0.0
    %118 = vmatpush.xpose.msra.mxu0 0.0
    %119 = vmatpush.xpose.msra.mxu0 %v103
    %120 = vmatpush.xpose.msra.mxu0 %v101
    %121 = vmatmul.f32.gmra.mxu0 %v97
    %v122 = vpop.f32.mrf.mxu0
    %v123 = vadd.f32 %v50, %v122
    %124 = vmatmul.f32.gmra.mxu0 %v99
    %v125 = vpop.f32.mrf.mxu0
    %v126 = vadd.f32 %v51, %v125
    %127 = vdwg.mxu0
    %vm128 = vcmask 130048
    %v129 = vsel %vm128, %v123, -inf
    %130 = vmax.xlane.f32.xlu0 %v129
    %v131 = vpop.xlane.xlu0 %130
    %v132 = vsel %vm128, %v126, -inf
    %133 = vmax.xlane.f32.xlu0 %v132
    %v134 = vpop.xlane.xlu0 %133
    %v135 = vsub.f32 %v123, %v131
    %v136 = vsub.f32 %v126, %v134
    %v137 = vmul.f32 %v135, 1.442695
    %v138 = vpow.pop %v137
    %v139 = vmul.f32 %v136, 1.442695
    %v140 = vpow.pop %v139
    %v141 = vsel %vm128, %v138, 0.0
    %142 = vadd.xlane.f32.xlu0 %v141
    %v143 = vpop.xlane.xlu0 %142
    %v144 = vsel %vm128, %v140, 0.0
    %145 = vadd.xlane.f32.xlu0 %v144
    %v146 = vpop.xlane.xlu0 %145
    %v147 = vrcp.pop %v143
    %v148 = vmul.f32 %v143, %v147
    %v149 = vsub.f32 1.0, %v148
    %v150 = vmul.f32 %v147, %v149
    %v151 = vadd.f32 %v147, %v150
    %vm152 = vweird.f32 %v143
    %vm153 = vweird.f32 %v147
    %vm154 = vmor %vm152, %vm153
    %v155 = vsel %vm154, %v147, %v151
    %v156 = vand.u32 2147483647, %v143
    %vm157 = vcmp.eq.f32.partialorder %v156, 8.507059e+37
    %v158 = vand.u32 %v143, 2147483648
    %v159 = vor.u32 1.1754944e-38, %v158
    %v160 = vsel %vm157, %v159, %v155
    %v161 = vmul.f32 %v138, %v160
    %v162 = vrcp.pop %v146
    %v163 = vmul.f32 %v146, %v162
    %v164 = vsub.f32 1.0, %v163
    %v165 = vmul.f32 %v162, %v164
    %v166 = vadd.f32 %v162, %v165
    %vm167 = vweird.f32 %v146
    %vm168 = vweird.f32 %v162
    %vm169 = vmor %vm167, %vm168
    %v170 = vsel %vm169, %v162, %v166
    %v171 = vand.u32 2147483647, %v146
    %vm172 = vcmp.eq.f32.partialorder %v171, 8.507059e+37
    %v173 = vand.u32 %v146, 2147483648
    %v174 = vor.u32 1.1754944e-38, %v173
    %v175 = vsel %vm172, %v174, %v170
    %v176 = vmul.f32 %v140, %v175
    %177 = vrot.lane.b32.xlu0 %v85, 64
    %v178 = vpop.permute.xlu0 %177
    %179 = vrot.lane.b32.xlu0 %v88, 64
    %v180 = vpop.permute.xlu0 %179
    %v184 = vsel %vm128, %v161, 0
    %v187 = vsel %vm128, %v176, 0
    %189 = vmatpush.msra.mxu0 0.0
    %190 = vmatpush.msra.mxu0 0.0
    %191 = vmatpush.msra.mxu0 0.0
    %192 = vmatpush.msra.mxu0 0.0
    %193 = vmatpush.msra.mxu0 0.0
    %194 = vmatpush.msra.mxu0 0.0
    %195 = vmatpush.msra.mxu0 0.0
    %196 = vmatpush.msra.mxu0 0.0
    %197 = vmatpush.msra.mxu0 0.0
    %198 = vmatpush.msra.mxu0 0.0
    %199 = vmatpush.msra.mxu0 0.0
    %200 = vmatpush.msra.mxu0 0.0
    %201 = vmatpush.msra.mxu0 0.0
    %202 = vmatpush.msra.mxu0 0.0
    %203 = vmatpush.msra.mxu0 %v180
    %204 = vmatpush.msra.mxu0 %v178
    %205 = vmatmul.f32.gmra.mxu0 %v184
    %v206 = vpop.f32.mrf.mxu0
    %v207 = vadd.f32 0.0, %v206
    %208 = vmatmul.f32.gmra.mxu0 %v187
    %v209 = vpop.f32.mrf.mxu0
    %v210 = vadd.f32 0.0, %v209
    %211 = vdwg.mxu0
    %212 = vrot.lane.b32.xlu0 %v85, 120
    %v213 = vpop.permute.xlu0 %212
    %214 = vrot.lane.b32.xlu0 %v88, 120
    %v215 = vpop.permute.xlu0 %214
    %216 = vrot.lane.b32.xlu0 %v85, 88
    %v217 = vpop.permute.xlu0 %216
    %218 = vrot.lane.b32.xlu0 %v88, 88
    %v219 = vpop.permute.xlu0 %218
    %v220 = vsel %vm96, %v213, 0
    %v222 = vsel %vm96, %v215, 0
    %v224 = vsel %vm96, %v217, 0
    %v226 = vsel %vm96, %v219, 0
    %228 = vmatpush.xpose.msra.mxu0 0.0
    %229 = vmatpush.xpose.msra.mxu0 0.0
    %230 = vmatpush.xpose.msra.mxu0 0.0
    %231 = vmatpush.xpose.msra.mxu0 0.0
    %232 = vmatpush.xpose.msra.mxu0 0.0
    %233 = vmatpush.xpose.msra.mxu0 0.0
    %234 = vmatpush.xpose.msra.mxu0 0.0
    %235 = vmatpush.xpose.msra.mxu0 0.0
    %236 = vmatpush.xpose.msra.mxu0 0.0
    %237 = vmatpush.xpose.msra.mxu0 0.0
    %238 = vmatpush.xpose.msra.mxu0 0.0
    %239 = vmatpush.xpose.msra.mxu0 0.0
    %240 = vmatpush.xpose.msra.mxu0 0.0
    %241 = vmatpush.xpose.msra.mxu0 0.0
    %242 = vmatpush.xpose.msra.mxu0 %v226
    %243 = vmatpush.xpose.msra.mxu0 %v224
    %244 = vmatmul.f32.gmra.mxu0 %v220
    %v245 = vpop.f32.mrf.mxu0
    %v246 = vadd.f32 %v50, %v245
    %247 = vmatmul.f32.gmra.mxu0 %v222
    %v248 = vpop.f32.mrf.mxu0
    %v249 = vadd.f32 %v51, %v248
    %250 = vdwg.mxu0
    %v251 = vsel %vm128, %v246, -inf
    %252 = vmax.xlane.f32.xlu0 %v251
    %v253 = vpop.xlane.xlu0 %252
    %v254 = vsel %vm128, %v249, -inf
    %255 = vmax.xlane.f32.xlu0 %v254
    %v256 = vpop.xlane.xlu0 %255
    %v257 = vsub.f32 %v246, %v253
    %v258 = vsub.f32 %v249, %v256
    %v259 = vmul.f32 %v257, 1.442695
    %v260 = vpow.pop %v259
    %v261 = vmul.f32 %v258, 1.442695
    %v262 = vpow.pop %v261
    %v263 = vsel %vm128, %v260, 0.0
    %264 = vadd.xlane.f32.xlu0 %v263
    %v265 = vpop.xlane.xlu0 %264
    %v266 = vsel %vm128, %v262, 0.0
    %267 = vadd.xlane.f32.xlu0 %v266
    %v268 = vpop.xlane.xlu0 %267
    %v269 = vrcp.pop %v265
    %v270 = vmul.f32 %v265, %v269
    %v271 = vsub.f32 1.0, %v270
    %v272 = vmul.f32 %v269, %v271
    %v273 = vadd.f32 %v269, %v272
    %vm274 = vweird.f32 %v265
    %vm275 = vweird.f32 %v269
    %vm276 = vmor %vm274, %vm275
    %v277 = vsel %vm276, %v269, %v273
    %v278 = vand.u32 2147483647, %v265
    %vm279 = vcmp.eq.f32.partialorder %v278, 8.507059e+37
    %v280 = vand.u32 %v265, 2147483648
    %v281 = vor.u32 1.1754944e-38, %v280
    %v282 = vsel %vm279, %v281, %v277
    %v283 = vmul.f32 %v260, %v282
    %v284 = vrcp.pop %v268
    %v285 = vmul.f32 %v268, %v284
    %v286 = vsub.f32 1.0, %v285
    %v287 = vmul.f32 %v284, %v286
    %v288 = vadd.f32 %v284, %v287
    %vm289 = vweird.f32 %v268
    %vm290 = vweird.f32 %v284
    %vm291 = vmor %vm289, %vm290
    %v292 = vsel %vm291, %v284, %v288
    %v293 = vand.u32 2147483647, %v268
    %vm294 = vcmp.eq.f32.partialorder %v293, 8.507059e+37
    %v295 = vand.u32 %v268, 2147483648
    %v296 = vor.u32 1.1754944e-38, %v295
    %v297 = vsel %vm294, %v296, %v292
    %v298 = vmul.f32 %v262, %v297
    %299 = vrot.lane.b32.xlu0 %v85, 56
    %v300 = vpop.permute.xlu0 %299
    %301 = vrot.lane.b32.xlu0 %v88, 56
    %v302 = vpop.permute.xlu0 %301
    %v306 = vsel %vm128, %v283, 0
    %v309 = vsel %vm128, %v298, 0
    %311 = vmatpush.msra.mxu0 0.0
    %312 = vmatpush.msra.mxu0 0.0
    %313 = vmatpush.msra.mxu0 0.0
    %314 = vmatpush.msra.mxu0 0.0
    %315 = vmatpush.msra.mxu0 0.0
    %316 = vmatpush.msra.mxu0 0.0
    %317 = vmatpush.msra.mxu0 0.0
    %318 = vmatpush.msra.mxu0 0.0
    %319 = vmatpush.msra.mxu0 0.0
    %320 = vmatpush.msra.mxu0 0.0
    %321 = vmatpush.msra.mxu0 0.0
    %322 = vmatpush.msra.mxu0 0.0
    %323 = vmatpush.msra.mxu0 0.0
    %324 = vmatpush.msra.mxu0 0.0
    %325 = vmatpush.msra.mxu0 %v302
    %326 = vmatpush.msra.mxu0 %v300
    %327 = vmatmul.f32.gmra.mxu0 %v306
    %v328 = vpop.f32.mrf.mxu0
    %v329 = vadd.f32 0.0, %v328
    %330 = vmatmul.f32.gmra.mxu0 %v309
    %v331 = vpop.f32.mrf.mxu0
    %v332 = vadd.f32 0.0, %v331
    %333 = vdwg.mxu0
    %334 = vrot.lane.b32.xlu0 %v85, 112
    %v335 = vpop.permute.xlu0 %334
    %336 = vrot.lane.b32.xlu0 %v88, 112
    %v337 = vpop.permute.xlu0 %336
    %338 = vrot.lane.b32.xlu0 %v85, 80
    %v339 = vpop.permute.xlu0 %338
    %340 = vrot.lane.b32.xlu0 %v88, 80
    %v341 = vpop.permute.xlu0 %340
    %v342 = vsel %vm96, %v335, 0
    %v344 = vsel %vm96, %v337, 0
    %v346 = vsel %vm96, %v339, 0
    %v348 = vsel %vm96, %v341, 0
    %350 = vmatpush.xpose.msra.mxu0 0.0
    %351 = vmatpush.xpose.msra.mxu0 0.0
    %352 = vmatpush.xpose.msra.mxu0 0.0
    %353 = vmatpush.xpose.msra.mxu0 0.0
    %354 = vmatpush.xpose.msra.mxu0 0.0
    %355 = vmatpush.xpose.msra.mxu0 0.0
    %356 = vmatpush.xpose.msra.mxu0 0.0
    %357 = vmatpush.xpose.msra.mxu0 0.0
    %358 = vmatpush.xpose.msra.mxu0 0.0
    %359 = vmatpush.xpose.msra.mxu0 0.0
    %360 = vmatpush.xpose.msra.mxu0 0.0
    %361 = vmatpush.xpose.msra.mxu0 0.0
    %362 = vmatpush.xpose.msra.mxu0 0.0
    %363 = vmatpush.xpose.msra.mxu0 0.0
    %364 = vmatpush.xpose.msra.mxu0 %v348
    %365 = vmatpush.xpose.msra.mxu0 %v346
    %366 = vmatmul.f32.gmra.mxu0 %v342
    %v367 = vpop.f32.mrf.mxu0
    %v368 = vadd.f32 %v50, %v367
    %369 = vmatmul.f32.gmra.mxu0 %v344
    %v370 = vpop.f32.mrf.mxu0
    %v371 = vadd.f32 %v51, %v370
    %372 = vdwg.mxu0
    %v373 = vsel %vm128, %v368, -inf
    %374 = vmax.xlane.f32.xlu0 %v373
    %v375 = vpop.xlane.xlu0 %374
    %v376 = vsel %vm128, %v371, -inf
    %377 = vmax.xlane.f32.xlu0 %v376
    %v378 = vpop.xlane.xlu0 %377
    %v379 = vsub.f32 %v368, %v375
    %v380 = vsub.f32 %v371, %v378
    %v381 = vmul.f32 %v379, 1.442695
    %v382 = vpow.pop %v381
    %v383 = vmul.f32 %v380, 1.442695
    %v384 = vpow.pop %v383
    %v385 = vsel %vm128, %v382, 0.0
    %386 = vadd.xlane.f32.xlu0 %v385
    %v387 = vpop.xlane.xlu0 %386
    %v388 = vsel %vm128, %v384, 0.0
    %389 = vadd.xlane.f32.xlu0 %v388
    %v390 = vpop.xlane.xlu0 %389
    %v391 = vrcp.pop %v387
    %v392 = vmul.f32 %v387, %v391
    %v393 = vsub.f32 1.0, %v392
    %v394 = vmul.f32 %v391, %v393
    %v395 = vadd.f32 %v391, %v394
    %vm396 = vweird.f32 %v387
    %vm397 = vweird.f32 %v391
    %vm398 = vmor %vm396, %vm397
    %v399 = vsel %vm398, %v391, %v395
    %v400 = vand.u32 2147483647, %v387
    %vm401 = vcmp.eq.f32.partialorder %v400, 8.507059e+37
    %v402 = vand.u32 %v387, 2147483648
    %v403 = vor.u32 1.1754944e-38, %v402
    %v404 = vsel %vm401, %v403, %v399
    %v405 = vmul.f32 %v382, %v404
    %v406 = vrcp.pop %v390
    %v407 = vmul.f32 %v390, %v406
    %v408 = vsub.f32 1.0, %v407
    %v409 = vmul.f32 %v406, %v408
    %v410 = vadd.f32 %v406, %v409
    %vm411 = vweird.f32 %v390
    %vm412 = vweird.f32 %v406
    %vm413 = vmor %vm411, %vm412
    %v414 = vsel %vm413, %v406, %v410
    %v415 = vand.u32 2147483647, %v390
    %vm416 = vcmp.eq.f32.partialorder %v415, 8.507059e+37
    %v417 = vand.u32 %v390, 2147483648
    %v418 = vor.u32 1.1754944e-38, %v417
    %v419 = vsel %vm416, %v418, %v414
    %v420 = vmul.f32 %v384, %v419
    %421 = vrot.lane.b32.xlu0 %v85, 48
    %v422 = vpop.permute.xlu0 %421
    %423 = vrot.lane.b32.xlu0 %v88, 48
    %v424 = vpop.permute.xlu0 %423
    %v428 = vsel %vm128, %v405, 0
    %v431 = vsel %vm128, %v420, 0
    %433 = vmatpush.msra.mxu0 0.0
    %434 = vmatpush.msra.mxu0 0.0
    %435 = vmatpush.msra.mxu0 0.0
    %436 = vmatpush.msra.mxu0 0.0
    %437 = vmatpush.msra.mxu0 0.0
    %438 = vmatpush.msra.mxu0 0.0
    %439 = vmatpush.msra.mxu0 0.0
    %440 = vmatpush.msra.mxu0 0.0
    %441 = vmatpush.msra.mxu0 0.0
    %442 = vmatpush.msra.mxu0 0.0
    %443 = vmatpush.msra.mxu0 0.0
    %444 = vmatpush.msra.mxu0 0.0
    %445 = vmatpush.msra.mxu0 0.0
    %446 = vmatpush.msra.mxu0 0.0
    %447 = vmatpush.msra.mxu0 %v424
    %448 = vmatpush.msra.mxu0 %v422
    %449 = vmatmul.f32.gmra.mxu0 %v428
    %v450 = vpop.f32.mrf.mxu0
    %v451 = vadd.f32 0.0, %v450
    %452 = vmatmul.f32.gmra.mxu0 %v431
    %v453 = vpop.f32.mrf.mxu0
    %v454 = vadd.f32 0.0, %v453
    %455 = vdwg.mxu0
    %456 = vrot.lane.b32.xlu0 %v85, 104
    %v457 = vpop.permute.xlu0 %456
    %458 = vrot.lane.b32.xlu0 %v88, 104
    %v459 = vpop.permute.xlu0 %458
    %460 = vrot.lane.b32.xlu0 %v85, 72
    %v461 = vpop.permute.xlu0 %460
    %462 = vrot.lane.b32.xlu0 %v88, 72
    %v463 = vpop.permute.xlu0 %462
    %v464 = vsel %vm96, %v457, 0
    %v466 = vsel %vm96, %v459, 0
    %v468 = vsel %vm96, %v461, 0
    %v470 = vsel %vm96, %v463, 0
    %472 = vmatpush.xpose.msra.mxu0 0.0
    %473 = vmatpush.xpose.msra.mxu0 0.0
    %474 = vmatpush.xpose.msra.mxu0 0.0
    %475 = vmatpush.xpose.msra.mxu0 0.0
    %476 = vmatpush.xpose.msra.mxu0 0.0
    %477 = vmatpush.xpose.msra.mxu0 0.0
    %478 = vmatpush.xpose.msra.mxu0 0.0
    %479 = vmatpush.xpose.msra.mxu0 0.0
    %480 = vmatpush.xpose.msra.mxu0 0.0
    %481 = vmatpush.xpose.msra.mxu0 0.0
    %482 = vmatpush.xpose.msra.mxu0 0.0
    %483 = vmatpush.xpose.msra.mxu0 0.0
    %484 = vmatpush.xpose.msra.mxu0 0.0
    %485 = vmatpush.xpose.msra.mxu0 0.0
    %486 = vmatpush.xpose.msra.mxu0 %v470
    %487 = vmatpush.xpose.msra.mxu0 %v468
    %488 = vmatmul.f32.gmra.mxu0 %v464
    %v489 = vpop.f32.mrf.mxu0
    %v490 = vadd.f32 %v50, %v489
    %491 = vmatmul.f32.gmra.mxu0 %v466
    %v492 = vpop.f32.mrf.mxu0
    %v493 = vadd.f32 %v51, %v492
    %494 = vdwg.mxu0
    %v495 = vsel %vm128, %v490, -inf
    %496 = vmax.xlane.f32.xlu0 %v495
    %v497 = vpop.xlane.xlu0 %496
    %v498 = vsel %vm128, %v493, -inf
    %499 = vmax.xlane.f32.xlu0 %v498
    %v500 = vpop.xlane.xlu0 %499
    %v501 = vsub.f32 %v490, %v497
    %v502 = vsub.f32 %v493, %v500
    %v503 = vmul.f32 %v501, 1.442695
    %v504 = vpow.pop %v503
    %v505 = vmul.f32 %v502, 1.442695
    %v506 = vpow.pop %v505
    %v507 = vsel %vm128, %v504, 0.0
    %508 = vadd.xlane.f32.xlu0 %v507
    %v509 = vpop.xlane.xlu0 %508
    %v510 = vsel %vm128, %v506, 0.0
    %511 = vadd.xlane.f32.xlu0 %v510
    %v512 = vpop.xlane.xlu0 %511
    %v513 = vrcp.pop %v509
    %v514 = vmul.f32 %v509, %v513
    %v515 = vsub.f32 1.0, %v514
    %v516 = vmul.f32 %v513, %v515
    %v517 = vadd.f32 %v513, %v516
    %vm518 = vweird.f32 %v509
    %vm519 = vweird.f32 %v513
    %vm520 = vmor %vm518, %vm519
    %v521 = vsel %vm520, %v513, %v517
    %v522 = vand.u32 2147483647, %v509
    %vm523 = vcmp.eq.f32.partialorder %v522, 8.507059e+37
    %v524 = vand.u32 %v509, 2147483648
    %v525 = vor.u32 1.1754944e-38, %v524
    %v526 = vsel %vm523, %v525, %v521
    %v527 = vmul.f32 %v504, %v526
    %v528 = vrcp.pop %v512
    %v529 = vmul.f32 %v512, %v528
    %v530 = vsub.f32 1.0, %v529
    %v531 = vmul.f32 %v528, %v530
    %v532 = vadd.f32 %v528, %v531
    %vm533 = vweird.f32 %v512
    %vm534 = vweird.f32 %v528
    %vm535 = vmor %vm533, %vm534
    %v536 = vsel %vm535, %v528, %v532
    %v537 = vand.u32 2147483647, %v512
    %vm538 = vcmp.eq.f32.partialorder %v537, 8.507059e+37
    %v539 = vand.u32 %v512, 2147483648
    %v540 = vor.u32 1.1754944e-38, %v539
    %v541 = vsel %vm538, %v540, %v536
    %v542 = vmul.f32 %v506, %v541
    %543 = vrot.lane.b32.xlu0 %v85, 40
    %v544 = vpop.permute.xlu0 %543
    %545 = vrot.lane.b32.xlu0 %v88, 40
    %v546 = vpop.permute.xlu0 %545
    %v550 = vsel %vm128, %v527, 0
    %v553 = vsel %vm128, %v542, 0
    %555 = vmatpush.msra.mxu0 0.0
    %556 = vmatpush.msra.mxu0 0.0
    %557 = vmatpush.msra.mxu0 0.0
    %558 = vmatpush.msra.mxu0 0.0
    %559 = vmatpush.msra.mxu0 0.0
    %560 = vmatpush.msra.mxu0 0.0
    %561 = vmatpush.msra.mxu0 0.0
    %562 = vmatpush.msra.mxu0 0.0
    %563 = vmatpush.msra.mxu0 0.0
    %564 = vmatpush.msra.mxu0 0.0
    %565 = vmatpush.msra.mxu0 0.0
    %566 = vmatpush.msra.mxu0 0.0
    %567 = vmatpush.msra.mxu0 0.0
    %568 = vmatpush.msra.mxu0 0.0
    %569 = vmatpush.msra.mxu0 %v546
    %570 = vmatpush.msra.mxu0 %v544
    %571 = vmatmul.f32.gmra.mxu0 %v550
    %v572 = vpop.f32.mrf.mxu0
    %v573 = vadd.f32 0.0, %v572
    %574 = vmatmul.f32.gmra.mxu0 %v553
    %v575 = vpop.f32.mrf.mxu0
    %v576 = vadd.f32 0.0, %v575
    %577 = vdwg.mxu0
    %580 = vrot.lane.b32.xlu0 %v329, 8
    %v581 = vpop.permute.xlu0 %580
    %582 = vrot.lane.b32.xlu0 %v332, 8
    %v583 = vpop.permute.xlu0 %582
    %588 = vrot.lane.b32.xlu0 %v451, 16
    %v589 = vpop.permute.xlu0 %588
    %590 = vrot.lane.b32.xlu0 %v454, 16
    %v591 = vpop.permute.xlu0 %590
    %596 = vrot.lane.b32.xlu0 %v573, 24
    %v597 = vpop.permute.xlu0 %596
    %598 = vrot.lane.b32.xlu0 %v576, 24
    %v599 = vpop.permute.xlu0 %598
    %v602 = vsel %vm96, %v207, %v581
    %v603 = vsel %vm96, %v210, %v583
    %v604 = vsel %vm128, %v602, %v589
    %v605 = vsel %vm128, %v603, %v591
    %vm606 = vcmask 195584
    %v607 = vsel %vm606, %v604, %v597
    %v608 = vsel %vm606, %v605, %v599
    %v609 = vld [vmem:[%s4] sm:$0xff]
    %v610 = vld [vmem:[%s4 + $0x8] sm:$0xff]
    %v611 = vld [vmem:[%s4 + $0x10] sm:$0xff]
    %v612 = vld [vmem:[%s4 + $0x18] sm:$0xff]
    %v613 = vld [vmem:[%s5] sm:$0x1]
    %v615 = vperm.slane %v613, 0
    %v618 = vsel %vm60, %v607, 0
    %v621 = vsel %vm60, %v608, 0
    %623 = vmatpush.msra.mxu0 0.0
    %624 = vmatpush.msra.mxu0 0.0
    %625 = vmatpush.msra.mxu0 0.0
    %626 = vmatpush.msra.mxu0 0.0
    %627 = vmatpush.msra.mxu0 0.0
    %628 = vmatpush.msra.mxu0 0.0
    %629 = vmatpush.msra.mxu0 0.0
    %630 = vmatpush.msra.mxu0 0.0
    %631 = vmatpush.msra.mxu0 0.0
    %632 = vmatpush.msra.mxu0 0.0
    %633 = vmatpush.msra.mxu0 0.0
    %634 = vmatpush.msra.mxu0 0.0
    %635 = vmatpush.msra.mxu0 %v612
    %636 = vmatpush.msra.mxu0 %v611
    %637 = vmatpush.msra.mxu0 %v610
    %638 = vmatpush.msra.mxu0 %v609
    %639 = vmatmul.f32.gmra.mxu0 %v618
    %v640 = vpop.f32.mrf.mxu0
    %v641 = vadd.f32 %v615, %v640
    %642 = vmatmul.f32.gmra.mxu0 %v621
    %v643 = vpop.f32.mrf.mxu0
    %v644 = vadd.f32 %v615, %v643
    %645 = vdwg.mxu0
    %v646 = vadd.f32 %v48, %v641
    %v647 = vadd.f32 %v49, %v644
    %v648 = vld [vmem:[%s6] sm:$0x1]
    %v649 = vld [vmem:[%s7] sm:$0x1]
    %v650 = vsel %vm60, %v646, 0.0
    %651 = vadd.xlane.f32.xlu0 %v650
    %v652 = vpop.xlane.xlu0 %651
    %v653 = vsel %vm60, %v647, 0.0
    %654 = vadd.xlane.f32.xlu0 %v653
    %v655 = vpop.xlane.xlu0 %654
    %v656 = vrcp.pop 32.0
    %v657 = vmul.f32 32.0, %v656
    %v658 = vsub.f32 1.0, %v657
    %v659 = vmul.f32 %v656, %v658
    %v660 = vadd.f32 %v656, %v659
    %vm661 = vweird.f32 %v656
    %v662 = vsel %vm661, %v656, %v660
    %v663 = vmul.f32 %v652, %v662
    %v664 = vmul.f32 %v655, %v662
    %v665 = vsub.f32 %v646, %v663
    %v666 = vsub.f32 %v647, %v664
    %v667 = vmul.f32 %v665, %v665
    %v668 = vmul.f32 %v666, %v666
    %v669 = vsel %vm60, %v667, 0.0
    %670 = vadd.xlane.f32.xlu0 %v669
    %v671 = vpop.xlane.xlu0 %670
    %v672 = vsel %vm60, %v668, 0.0
    %673 = vadd.xlane.f32.xlu0 %v672
    %v674 = vpop.xlane.xlu0 %673
    %v675 = vmul.f32 %v671, %v662
    %v676 = vmul.f32 %v674, %v662
    %v677 = vadd.f32 %v675, 1e-05
    %v678 = vadd.f32 %v676, 1e-05
    %v679 = vrsqrt.pop %v677
    %v680 = vmul.f32 %v679, %v677
    %v681 = vmul.f32 %v680, %v679
    %v682 = vmul.f32 0.5, %v681
    %v683 = vsub.f32 1.5, %v682
    %v684 = vmul.f32 %v679, %v683
    %vm685 = vweird.f32 %v677
    %vm686 = vweird.f32 %v679
    %vm687 = vmor %vm685, %vm686
    %v688 = vsel %vm687, %v679, %v684
    %v689 = vrsqrt.pop %v678
    %v690 = vmul.f32 %v689, %v678
    %v691 = vmul.f32 %v690, %v689
    %v692 = vmul.f32 0.5, %v691
    %v693 = vsub.f32 1.5, %v692
    %v694 = vmul.f32 %v689, %v693
    %vm695 = vweird.f32 %v678
    %vm696 = vweird.f32 %v689
    %vm697 = vmor %vm695, %vm696
    %v698 = vsel %vm697, %v689, %v694
    %v699 = vmul.f32 %v665, %v688
    %v700 = vmul.f32 %v666, %v698
    %v702 = vperm.slane %v648, 0
    %v704 = vmul.f32 %v699, %v702
    %v705 = vmul.f32 %v700, %v702
    %v707 = vperm.slane %v649, 0
    %v709 = vadd.f32 %v704, %v707
    %v710 = vadd.f32 %v705, %v707
    %v711 = vld [vmem:[%s10] sm:$0xff]
    %v712 = vld [vmem:[%s10 + $0x8] sm:$0xff]
    %v713 = vld [vmem:[%s10 + $0x10] sm:$0xff]
    %v714 = vld [vmem:[%s10 + $0x18] sm:$0xff]
    %v715 = vld [vmem:[%s11] sm:$0x1]
    %v717 = vperm.slane %v715, 0
    %v720 = vsel %vm60, %v709, 0
    %v723 = vsel %vm60, %v710, 0
    %725 = vmatpush.msra.mxu0 0.0
    %726 = vmatpush.msra.mxu0 0.0
    %727 = vmatpush.msra.mxu0 0.0
    %728 = vmatpush.msra.mxu0 0.0
    %729 = vmatpush.msra.mxu0 0.0
    %730 = vmatpush.msra.mxu0 0.0
    %731 = vmatpush.msra.mxu0 0.0
    %732 = vmatpush.msra.mxu0 0.0
    %733 = vmatpush.msra.mxu0 0.0
    %734 = vmatpush.msra.mxu0 0.0
    %735 = vmatpush.msra.mxu0 0.0
    %736 = vmatpush.msra.mxu0 0.0
    %737 = vmatpush.msra.mxu0 %v714
    %738 = vmatpush.msra.mxu0 %v713
    %739 = vmatpush.msra.mxu0 %v712
    %740 = vmatpush.msra.mxu0 %v711
    %741 = vmatmul.f32.gmra.mxu0 %v720
    %v742 = vpop.f32.mrf.mxu0
    %v743 = vadd.f32 %v717, %v742
    %744 = vmatmul.f32.gmra.mxu0 %v723
    %v745 = vpop.f32.mrf.mxu0
    %v746 = vadd.f32 %v717, %v745
    %747 = vdwg.mxu0
    %v748 = vmul.f32 %v743, 0.5
    %v749 = vmul.f32 %v746, 0.5
    %v750 = vmul.f32 %v743, 0.70710677
    %v751 = vmul.f32 %v746, 0.70710677
    %v752 = vmul.f32 %v750, %v750
    %v753 = vmin.f32 16.0, %v752
    %v754 = vmul.f32 %v753, 2.1237322e-06
    %v755 = vadd.f32 %v754, 0.00028619796
    %v756 = vmul.f32 %v753, %v755
    %v757 = vadd.f32 %v756, 0.0036580483
    %v758 = vmul.f32 %v753, %v757
    %v759 = vadd.f32 %v758, 0.05243302
    %v760 = vmul.f32 %v753, %v759
    %v761 = vadd.f32 %v760, 0.18741608
    %v762 = vmul.f32 %v753, %v761
    %v763 = vadd.f32 %v762, 1.1283791
    %v764 = vmul.f32 %v750, %v763
    %v765 = vmul.f32 %v753, 3.8918573e-05
    %v766 = vadd.f32 %v765, 0.001143296
    %v767 = vmul.f32 %v753, %v766
    %v768 = vadd.f32 %v767, 0.014752088
    %v769 = vmul.f32 %v753, %v768
    %v770 = vadd.f32 %v769, 0.112945676
    %v771 = vmul.f32 %v753, %v770
    %v772 = vadd.f32 %v771, 0.4994258
    %v773 = vmul.f32 %v753, %v772
    %v774 = vadd.f32 %v773, 1.0
    %v775 = vrcp.pop %v774
    %v776 = vmul.f32 %v774, %v775
    %v777 = vsub.f32 1.0, %v776
    %v778 = vmul.f32 %v775, %v777
    %v779 = vadd.f32 %v775, %v778
    %vm780 = vweird.f32 %v774
    %vm781 = vweird.f32 %v775
    %vm782 = vmor %vm780, %vm781
    %v783 = vsel %vm782, %v775, %v779
    %v784 = vand.u32 2147483647, %v774
    %vm785 = vcmp.eq.f32.partialorder %v784, 8.507059e+37
    %v786 = vand.u32 %v774, 2147483648
    %v787 = vor.u32 1.1754944e-38, %v786
    %v788 = vsel %vm785, %v787, %v783
    %v789 = vmul.f32 %v764, %v788
    %v790 = vmin.f32 %v789, 1.0
    %v791 = vmax.f32 %v790, -1.0
    %v792 = vmul.f32 %v751, %v751
    %v793 = vmin.f32 16.0, %v792
    %v794 = vmul.f32 %v793, 2.1237322e-06
    %v795 = vadd.f32 %v794, 0.00028619796
    %v796 = vmul.f32 %v793, %v795
    %v797 = vadd.f32 %v796, 0.0036580483
    %v798 = vmul.f32 %v793, %v797
    %v799 = vadd.f32 %v798, 0.05243302
    %v800 = vmul.f32 %v793, %v799
    %v801 = vadd.f32 %v800, 0.18741608
    %v802 = vmul.f32 %v793, %v801
    %v803 = vadd.f32 %v802, 1.1283791
    %v804 = vmul.f32 %v751, %v803
    %v805 = vmul.f32 %v793, 3.8918573e-05
    %v806 = vadd.f32 %v805, 0.001143296
    %v807 = vmul.f32 %v793, %v806
    %v808 = vadd.f32 %v807, 0.014752088
    %v809 = vmul.f32 %v793, %v808
    %v810 = vadd.f32 %v809, 0.112945676
    %v811 = vmul.f32 %v793, %v810
    %v812 = vadd.f32 %v811, 0.4994258
    %v813 = vmul.f32 %v793, %v812
    %v814 = vadd.f32 %v813, 1.0
    %v815 = vrcp.pop %v814
    %v816 = vmul.f32 %v814, %v815
    %v817 = vsub.f32 1.0, %v816
    %v818 = vmul.f32 %v815, %v817
    %v819 = vadd.f32 %v815, %v818
    %vm820 = vweird.f32 %v814
    %vm821 = vweird.f32 %v815
    %vm822 = vmor %vm820, %vm821
    %v823 = vsel %vm822, %v815, %v819
    %v824 = vand.u32 2147483647, %v814
    %vm825 = vcmp.eq.f32.partialorder %v824, 8.507059e+37
    %v826 = vand.u32 %v814, 2147483648
    %v827 = vor.u32 1.1754944e-38, %v826
    %v828 = vsel %vm825, %v827, %v823
    %v829 = vmul.f32 %v804, %v828
    %v830 = vmin.f32 %v829, 1.0
    %v831 = vmax.f32 %v830, -1.0
    %v832 = vadd.f32 %v791, 1.0
    %v833 = vadd.f32 %v831, 1.0
    %v834 = vmul.f32 %v748, %v832
    %v835 = vmul.f32 %v749, %v833
    %v836 = vld [vmem:[%s12] sm:$0xff]
    %v837 = vld [vmem:[%s12 + $0x8] sm:$0xff]
    %v838 = vld [vmem:[%s12 + $0x10] sm:$0xff]
    %v839 = vld [vmem:[%s12 + $0x18] sm:$0xff]
    %v840 = vld [vmem:[%s12 + $0x20] sm:$0xff]
    %v841 = vld [vmem:[%s12 + $0x28] sm:$0xff]
    %v842 = vld [vmem:[%s12 + $0x30] sm:$0xff]
    %v843 = vld [vmem:[%s12 + $0x38] sm:$0xff]
    %v844 = vld [vmem:[%s12 + $0x40] sm:$0xff]
    %v845 = vld [vmem:[%s12 + $0x48] sm:$0xff]
    %v846 = vld [vmem:[%s12 + $0x50] sm:$0xff]
    %v847 = vld [vmem:[%s12 + $0x58] sm:$0xff]
    %v848 = vld [vmem:[%s12 + $0x60] sm:$0xff]
    %v849 = vld [vmem:[%s12 + $0x68] sm:$0xff]
    %v850 = vld [vmem:[%s12 + $0x70] sm:$0xff]
    %v851 = vld [vmem:[%s12 + $0x78] sm:$0xff]
    %v852 = vld [vmem:[%s13] sm:$0x1]
    %v854 = vperm.slane %v852, 0
    %856 = vmatpush.msra.mxu0 %v851
    %857 = vmatpush.msra.mxu0 %v850
    %858 = vmatpush.msra.mxu0 %v849
    %859 = vmatpush.msra.mxu0 %v848
    %860 = vmatpush.msra.mxu0 %v847
    %861 = vmatpush.msra.mxu0 %v846
    %862 = vmatpush.msra.mxu0 %v845
    %863 = vmatpush.msra.mxu0 %v844
    %864 = vmatpush.msra.mxu0 %v843
    %865 = vmatpush.msra.mxu0 %v842
    %866 = vmatpush.msra.mxu0 %v841
    %867 = vmatpush.msra.mxu0 %v840
    %868 = vmatpush.msra.mxu0 %v839
    %869 = vmatpush.msra.mxu0 %v838
    %870 = vmatpush.msra.mxu0 %v837
    %871 = vmatpush.msra.mxu0 %v836
    %872 = vmatmul.f32.gmra.mxu0 %v834
    %v873 = vpop.f32.mrf.mxu0
    %v874 = vadd.f32 %v854, %v873
    %875 = vmatmul.f32.gmra.mxu0 %v835
    %v876 = vpop.f32.mrf.mxu0
    %v877 = vadd.f32 %v854, %v876
    %878 = vdwg.mxu0
    %v879 = vadd.f32 %v709, %v874
    %v880 = vadd.f32 %v710, %v877
    %v881 = vld [vmem:[%s8] sm:$0x1]
    %v882 = vld [vmem:[%s9] sm:$0x1]
    %v883 = vsel %vm60, %v879, 0.0
    %884 = vadd.xlane.f32.xlu0 %v883
    %v885 = vpop.xlane.xlu0 %884
    %v886 = vsel %vm60, %v880, 0.0
    %887 = vadd.xlane.f32.xlu0 %v886
    %v888 = vpop.xlane.xlu0 %887
    %v889 = vmul.f32 %v885, %v662
    %v890 = vmul.f32 %v888, %v662
    %v891 = vsub.f32 %v879, %v889
    %v892 = vsub.f32 %v880, %v890
    %v893 = vmul.f32 %v891, %v891
    %v894 = vmul.f32 %v892, %v892
    %v895 = vsel %vm60, %v893, 0.0
    %896 = vadd.xlane.f32.xlu0 %v895
    %v897 = vpop.xlane.xlu0 %896
    %v898 = vsel %vm60, %v894, 0.0
    %899 = vadd.xlane.f32.xlu0 %v898
    %v900 = vpop.xlane.xlu0 %899
    %v901 = vmul.f32 %v897, %v662
    %v902 = vmul.f32 %v900, %v662
    %v903 = vadd.f32 %v901, 1e-05
    %v904 = vadd.f32 %v902, 1e-05
    %v905 = vrsqrt.pop %v903
    %v906 = vmul.f32 %v905, %v903
    %v907 = vmul.f32 %v906, %v905
    %v908 = vmul.f32 0.5, %v907
    %v909 = vsub.f32 1.5, %v908
    %v910 = vmul.f32 %v905, %v909
    %vm911 = vweird.f32 %v903
    %vm912 = vweird.f32 %v905
    %vm913 = vmor %vm911, %vm912
    %v914 = vsel %vm913, %v905, %v910
    %v915 = vrsqrt.pop %v904
    %v916 = vmul.f32 %v915, %v904
    %v917 = vmul.f32 %v916, %v915
    %v918 = vmul.f32 0.5, %v917
    %v919 = vsub.f32 1.5, %v918
    %v920 = vmul.f32 %v915, %v919
    %vm921 = vweird.f32 %v904
    %vm922 = vweird.f32 %v915
    %vm923 = vmor %vm921, %vm922
    %v924 = vsel %vm923, %v915, %v920
    %v925 = vmul.f32 %v891, %v914
    %v926 = vmul.f32 %v892, %v924
    %v928 = vperm.slane %v881, 0
    %v930 = vmul.f32 %v925, %v928
    %v931 = vmul.f32 %v926, %v928
    %v933 = vperm.slane %v882, 0
    %v935 = vadd.f32 %v930, %v933
    %v936 = vadd.f32 %v931, %v933
    %937 = vst.msk [vmem:[#allocation2] sm:$0xff] %vm60, %v935
    %938 = vst.msk [vmem:[#allocation2 + $0x8] sm:$0xff] %vm60, %v936
    // Predicated region
    $region58: #{encoder_block_forward.1} parent=1 // pred_check
      _
    $region59: #{encoder_block_forward.1} parent=1 // pred_check_branch
      %940 = sbr.rel (0) target = $region61
    $region60: #{encoder_block_forward.1} parent=1 // pred_region
      %942 = vsyncadd [#allocation3], 0
      %s943 = sshll.u32 [#allocation2], 4
      %s944 = int_to_ptr.vmem [resolvable:$true] %s943
      %s945 = sshll.u32 %s14, 4
      %s946 = int_to_ptr.hbm [resolvable:$true] %s945
      %951 = dma.vmem_to_hbm [thread:$0]  %s944, 256, %s946, [#allocation3], 128, 128, 8
    $region61: #{encoder_block_forward.1} parent=1 // pred_fallthru
      _
    // Predicated region
    $region62: #{encoder_block_forward.1} parent=1 // pred_check
      _
    $region63: #{encoder_block_forward.1} parent=1 // pred_check_branch
      %953 = sbr.rel (0) target = $region65
    $region64: #{encoder_block_forward.1} parent=1 // pred_region
      %955 = dma.done [#allocation3], 256
    $region65: #{encoder_block_forward.1} parent=1 // pred_fallthru
      _
    %956 = vsyncpa [#allocation3], 1

</llo_original>
